<compile_context>
chip_gen: v6e
topology: v6e:2x2x1
jax: 0.10.0
libtpu: 0.0.40
codegen_flags: <defaults>
</compile_context>

<pallas_src>
import functools

import jax
import jax.numpy as jnp
from jax.experimental import pallas as pl
from jax.experimental.pallas import tpu as pltpu


def _round_up(x, m):
    return (x + m - 1) // m * m


# ---------------------------------------------------------------------------
# Primary kernel: lane-dense compute, single XLU transpose before the store.
# ---------------------------------------------------------------------------
def _gs_lane_dense_kernel(dist_ref, off_ref, out_ref, *, coeff, resolution):
    # dist_ref: (1, TILE_N)   distances, N on lanes (lane-dense)
    # off_ref:  (R_PAD, 1)    gaussian centres on sublanes (resident)
    # out_ref:  (TILE_N, R)   output tile in the module's (N, R) layout
    d = dist_ref[...] - off_ref[...]            # (R_PAD, TILE_N) via broadcast
    e = jnp.exp(coeff * d * d)                  # EUP at full lane occupancy
    t = jnp.transpose(e, (1, 0))                # XLU transpose (idle slot)
    out_ref[...] = t[:, :resolution].astype(out_ref.dtype)


def _call_lane_dense(dist_row, off_col, n, tile, resolution, out_dtype, coeff):
    r_pad = off_col.shape[0]
    cost = pl.CostEstimate(
        flops=3 * n * resolution,
        transcendentals=n * resolution,
        bytes_accessed=4 * n + 4 * r_pad
        + n * resolution * jnp.dtype(out_dtype).itemsize,
    )
    return pl.pallas_call(
        functools.partial(_gs_lane_dense_kernel, coeff=coeff,
                          resolution=resolution),
        out_shape=jax.ShapeDtypeStruct((n, resolution), out_dtype),
        grid_spec=pltpu.PrefetchScalarGridSpec(
            num_scalar_prefetch=0,
            grid=(pl.cdiv(n, tile),),
            in_specs=[
                pl.BlockSpec((1, tile), lambda i: (0, i)),     # dist, lane-dense
                pl.BlockSpec((r_pad, 1), lambda i: (0, 0)),    # centres, resident
            ],
            out_specs=pl.BlockSpec((tile, resolution), lambda i: (i, 0)),
        ),
        compiler_params=pltpu.CompilerParams(
            dimension_semantics=("parallel",),
            vmem_limit_bytes=32 * 1024 * 1024,
        ),
        cost_estimate=cost,
    )(dist_row, off_col)


# ---------------------------------------------------------------------------
# Fallback kernel: row-major (N on sublanes) layout. Always lowers; used only
# if the in-kernel transpose of the primary kernel is rejected by the compiler.
# ---------------------------------------------------------------------------
def _gs_rowmajor_kernel(dist_ref, off_ref, out_ref, *, coeff):
    # dist_ref: (TILE_N, 1), off_ref: (1, R), out_ref: (TILE_N, R)
    d = dist_ref[...] - off_ref[...]
    out_ref[...] = jnp.exp(coeff * d * d).astype(out_ref.dtype)


def _call_rowmajor(dist_col, off_row, n, tile, resolution, out_dtype, coeff):
    return pl.pallas_call(
        functools.partial(_gs_rowmajor_kernel, coeff=coeff),
        out_shape=jax.ShapeDtypeStruct((n, resolution), out_dtype),
        grid_spec=pltpu.PrefetchScalarGridSpec(
            num_scalar_prefetch=0,
            grid=(pl.cdiv(n, tile),),
            in_specs=[
                pl.BlockSpec((tile, 1), lambda i: (i, 0)),
                pl.BlockSpec((1, resolution), lambda i: (0, 0)),
            ],
            out_specs=pl.BlockSpec((tile, resolution), lambda i: (i, 0)),
        ),
        compiler_params=pltpu.CompilerParams(
            dimension_semantics=("parallel",),
            vmem_limit_bytes=32 * 1024 * 1024,
        ),
    )(dist_col, off_row)


@functools.lru_cache(maxsize=None)
def _lane_dense_supported(resolution, r_pad):
    """Probe (once per resolution) that Mosaic lowers the in-kernel transpose."""
    try:
        d = jnp.zeros((1, 128), jnp.float32)
        o = jnp.zeros((r_pad, 1), jnp.float32)
        jax.block_until_ready(
            _call_lane_dense(d, o, 128, 128, resolution, jnp.float32, -1.0))
        return True
    except Exception:  # pragma: no cover - depends on compiler version
        return False


# ---------------------------------------------------------------------------
# Public wrapper: matches GaussianSmearing.forward semantics.
# ---------------------------------------------------------------------------
def gaussian_smearing(dist, *, start=0.0, stop=5.0, resolution=50, width=0.05,
                      tile_n=4096, out_dtype=jnp.float32):
    """dist: (N,) float32 -> (N, resolution), matching the torch module."""
    dist = jnp.asarray(dist, jnp.float32).reshape(-1)
    n = int(dist.shape[0])
    coeff = -0.5 / ((stop - start) * width) ** 2
    offset = jnp.linspace(start, stop, resolution, dtype=jnp.float32)
    r_pad = _round_up(resolution, 8)

    # Tile along N: multiple of 128 (lane width), big enough to amortise the
    # ~0.35us per-step overhead, small enough to stay well inside every
    # generation's scoped-VMEM default and to keep >= ~8 grid steps for
    # moderate N (dual-TC sharding on v7x).
    tile = max(128, min(_round_up(tile_n, 128),
                        _round_up(pl.cdiv(n, 8), 128)))

    if _lane_dense_supported(resolution, r_pad):
        dist_row = dist.reshape(1, n)
        off_col = jnp.concatenate(
            [offset, jnp.full((r_pad - resolution,), stop, jnp.float32)]
        ).reshape(r_pad, 1)
        return _call_lane_dense(dist_row, off_col, n, tile, resolution,
                                out_dtype, coeff)

    # Fallback: row-major layout (lane-sparse but always compilable).
    tile_f = max(8, min(2048, _round_up(pl.cdiv(n, 8), 8)))
    return _call_rowmajor(dist.reshape(n, 1), offset.reshape(1, resolution),
                          n, tile_f, resolution, out_dtype, coeff)


def gaussian_smearing_ref(dist, *, start=0.0, stop=5.0, resolution=50,
                          width=0.05):
    offset = jnp.linspace(start, stop, resolution, dtype=jnp.float32)
    coeff = -0.5 / ((stop - start) * width) ** 2
    d = dist[:, None] - offset[None, :]
    return jnp.exp(coeff * d * d)


if __name__ == "__main__":
    # Case 1: ragged edge count (exercises the cdiv grid + masked last block).
    n_edges = 500
    dist = jax.random.uniform(jax.random.PRNGKey(0), (n_edges,),
                              dtype=jnp.float32, minval=0.0, maxval=5.0)
    out = jax.block_until_ready(gaussian_smearing(dist))
    ref = gaussian_smearing_ref(dist)
    assert out.shape == (n_edges, 50)
    assert out.dtype == jnp.float32
    assert jnp.allclose(out, ref, atol=1e-5, rtol=1e-5)

    # Case 2: tile-aligned edge count (multiple full grid steps).
    n_edges2 = 1024
    dist2 = jax.random.uniform(jax.random.PRNGKey(1), (n_edges2,),
                               dtype=jnp.float32, minval=0.0, maxval=5.0)
    out2 = jax.block_until_ready(gaussian_smearing(dist2))
    ref2 = gaussian_smearing_ref(dist2)
    assert out2.shape == (n_edges2, 50)
    assert jnp.allclose(out2, ref2, atol=1e-5, rtol=1e-5)

    print("KERNEL_OK")
</pallas_src>

<mosaic_0001>
module attributes {stable_mosaic.version = 11 : i64} {
  func.func @_gs_lane_dense_kernel(%arg0: i32, %arg1: memref<1x128xf32, #tpu.memory_space<vmem>>, %arg2: memref<56x1xf32, #tpu.memory_space<vmem>>, %arg3: memref<128x50xf32, #tpu.memory_space<vmem>>) attributes {dimension_semantics = [#tpu.dimension_semantics<parallel>], iteration_bounds = array<i64: 1>, scalar_prefetch = 0 : i64, scratch_operands = 0 : i64, tpu.core_type = #tpu.core_type<tc>, window_params = [{transform_indices = @transform_0, window_bounds = array<i64: 1, 128>}, {pipeline_mode = #tpu.pipeline_mode<synchronous>, transform_indices = @transform_1, window_bounds = array<i64: 56, 1>}, {transform_indices = @transform_2, window_bounds = array<i64: 128, 50>}]} {
    %c0 = arith.constant 0 : index
    %c0_0 = arith.constant 0 : index
    %0 = vector.load %arg1[%c0, %c0_0] : memref<1x128xf32, #tpu.memory_space<vmem>>, vector<1x128xf32>
    %c0_1 = arith.constant 0 : index
    %c0_2 = arith.constant 0 : index
    %1 = vector.load %arg2[%c0_1, %c0_2] : memref<56x1xf32, #tpu.memory_space<vmem>>, vector<56x1xf32>
    %2 = vector.broadcast %0 : vector<1x128xf32> to vector<56x128xf32>
    %3 = vector.broadcast %1 : vector<56x1xf32> to vector<56x128xf32>
    %4 = arith.subf %2, %3 : vector<56x128xf32>
    %cst = arith.constant -1.000000e+00 : f32
    %5 = vector.broadcast %cst : f32 to vector<56x128xf32>
    %6 = arith.mulf %5, %4 : vector<56x128xf32>
    %7 = arith.mulf %6, %4 : vector<56x128xf32>
    %8 = math.exp %7 : vector<56x128xf32>
    %9 = tpu.transpose %8, [1, 0] : vector<56x128xf32> -> vector<128x56xf32>
    %10 = vector.extract_strided_slice %9 {offsets = [0, 0], sizes = [128, 50], strides = [1, 1]} : vector<128x56xf32> to vector<128x50xf32>
    %c0_3 = arith.constant 0 : index
    %c0_4 = arith.constant 0 : index
    %11 = vector.load %arg3[%c0_3, %c0_4] : memref<128x50xf32, #tpu.memory_space<vmem>>, vector<128x50xf32>
    tpu.vector_store %arg3[%c0_3, %c0_4], %10 {strides = array<i32>} : memref<128x50xf32, #tpu.memory_space<vmem>>, vector<128x50xf32>,
    return
  }
  func.func @transform_0(%arg0: i32) -> (i32, i32) {
    %c0_i32 = arith.constant 0 : i32
    %c0_i32_0 = arith.constant 0 : i32
    return %c0_i32, %arg0 : i32, i32
  }
  func.func @transform_1(%arg0: i32) -> (i32, i32) {
    %c0_i32 = arith.constant 0 : i32
    %c0_i32_0 = arith.constant 0 : i32
    %c0_i32_1 = arith.constant 0 : i32
    return %c0_i32, %c0_i32_0 : i32, i32
  }
  func.func @transform_2(%arg0: i32) -> (i32, i32) {
    %c0_i32 = arith.constant 0 : i32
    %c0_i32_0 = arith.constant 0 : i32
    return %arg0, %c0_i32 : i32, i32
  }
}

module attributes {stable_mosaic.version = 11 : i64} {
  func.func @_gs_rowmajor_kernel(%arg0: i32, %arg1: memref<64x1xf32, #tpu.memory_space<vmem>>, %arg2: memref<1x50xf32, #tpu.memory_space<vmem>>, %arg3: memref<64x50xf32, #tpu.memory_space<vmem>>) attributes {dimension_semantics = [#tpu.dimension_semantics<parallel>], iteration_bounds = array<i64: 8>, scalar_prefetch = 0 : i64, scratch_operands = 0 : i64, tpu.core_type = #tpu.core_type<tc>, window_params = [{transform_indices = @transform_0, window_bounds = array<i64: 64, 1>}, {pipeline_mode = #tpu.pipeline_mode<synchronous>, transform_indices = @transform_1, window_bounds = array<i64: 1, 50>}, {transform_indices = @transform_2, window_bounds = array<i64: 64, 50>}]} {
    %c0 = arith.constant 0 : index
    %c0_0 = arith.constant 0 : index
    %0 = vector.load %arg1[%c0, %c0_0] : memref<64x1xf32, #tpu.memory_space<vmem>>, vector<64x1xf32>
    %c0_1 = arith.constant 0 : index
    %c0_2 = arith.constant 0 : index
    %1 = vector.load %arg2[%c0_1, %c0_2] : memref<1x50xf32, #tpu.memory_space<vmem>>, vector<1x50xf32>
    %2 = vector.broadcast %0 : vector<64x1xf32> to vector<64x50xf32>
    %3 = vector.broadcast %1 : vector<1x50xf32> to vector<64x50xf32>
    %4 = arith.subf %2, %3 : vector<64x50xf32>
    %cst = arith.constant -8.000000e+00 : f32
    %5 = vector.broadcast %cst : f32 to vector<64x50xf32>
    %6 = arith.mulf %5, %4 : vector<64x50xf32>
    %7 = arith.mulf %6, %4 : vector<64x50xf32>
    %8 = math.exp %7 : vector<64x50xf32>
    %c0_3 = arith.constant 0 : index
    %c0_4 = arith.constant 0 : index
    %9 = vector.load %arg3[%c0_3, %c0_4] : memref<64x50xf32, #tpu.memory_space<vmem>>, vector<64x50xf32>
    tpu.vector_store %arg3[%c0_3, %c0_4], %8 {strides = array<i32>} : memref<64x50xf32, #tpu.memory_space<vmem>>, vector<64x50xf32>,
    return
  }
  func.func @transform_0(%arg0: i32) -> (i32, i32) {
    %c0_i32 = arith.constant 0 : i32
    %c0_i32_0 = arith.constant 0 : i32
    return %arg0, %c0_i32 : i32, i32
  }
  func.func @transform_1(%arg0: i32) -> (i32, i32) {
    %c0_i32 = arith.constant 0 : i32
    %c0_i32_0 = arith.constant 0 : i32
    %c0_i32_1 = arith.constant 0 : i32
    return %c0_i32, %c0_i32_0 : i32, i32
  }
  func.func @transform_2(%arg0: i32) -> (i32, i32) {
    %c0_i32 = arith.constant 0 : i32
    %c0_i32_0 = arith.constant 0 : i32
    return %arg0, %c0_i32 : i32, i32
  }
}

</mosaic_0001>

<llo_original>
// kernel: tpu_custom_call.1
$region0: #{tpu_custom_call.1}
  #allocation0 [shape = 'u32[]', space=smem, size = 0x4, offset = 0x4, fixed_abs, tag = 'smem constant byte address 0x4 - core index']
  #allocation1 [shape = 'u32[144,128]{1,0:T(1,128)}', space=vmem, size = 0x12000, scoped, tag = 'internal scratch']
  %s0 = inlined_call_operand.vmem [shape: f32[1,128], index: 0, kind: input, shape index: {}]
  %s1 = inlined_call_operand.vmem [shape: f32[56,1], index: 1, kind: input, shape index: {}]
  %s2 = inlined_call_operand.vmem [shape: f32[128,50], index: 2, kind: output, shape index: {}]
  %s3 = sld [smem:[#allocation0]]
  $region18: #{tpu_custom_call.1} parent=0
    _
  %s5 = ssub.s32 1, %s3
  %s6 = scalar_select 0, %s5, %s3
  // Predicated region
  $region2: #{tpu_custom_call.1} parent=0 // pred_check
    _
  $region3: #{tpu_custom_call.1} parent=0 // pred_check_branch
    %8 = sbr.rel (0) target = $region5
  $region4: #{tpu_custom_call.1} parent=0 // pred_region
    _
  $region5: #{tpu_custom_call.1} parent=0 // pred_fallthru
    _
  // Predicated region
  $region6: #{tpu_custom_call.1} parent=0 // pred_check
    _
  $region7: #{tpu_custom_call.1} parent=0 // pred_check_branch
    %10 = sbr.rel (0) target = $region9
  $region8: #{tpu_custom_call.1} parent=0 // pred_region
    _
  $region9: #{tpu_custom_call.1} parent=0 // pred_fallthru
    _
  %v11 = vld [vmem:[%s0] sm:$0x1]
  %v12 = vld [vmem:[%s1] sm:$0xff]
  %v13 = vld [vmem:[%s1 + $0x8] sm:$0xff]
  %v14 = vld [vmem:[%s1 + $0x10] sm:$0xff]
  %v15 = vld [vmem:[%s1 + $0x18] sm:$0xff]
  %v16 = vld [vmem:[%s1 + $0x20] sm:$0xff]
  %v17 = vld [vmem:[%s1 + $0x28] sm:$0xff]
  %v18 = vld [vmem:[%s1 + $0x30] sm:$0xff]
  %v20 = vlaneseq
  %v21 = vshrl.u32 %v20, 7
  %v22 = vsub.s32 0, %v21
  %v23 = vrot.slane %v11, %v22
  %26 = vset.pattern.permute.xlu0 0
  %27 = vperm.xlu0 %26, %v12
  %v28 = vpop.permute.xlu0 %27
  %31 = vset.pattern.permute.xlu0 0
  %32 = vperm.xlu0 %31, %v13
  %v33 = vpop.permute.xlu0 %32
  %36 = vset.pattern.permute.xlu0 0
  %37 = vperm.xlu0 %36, %v14
  %v38 = vpop.permute.xlu0 %37
  %41 = vset.pattern.permute.xlu0 0
  %42 = vperm.xlu0 %41, %v15
  %v43 = vpop.permute.xlu0 %42
  %46 = vset.pattern.permute.xlu0 0
  %47 = vperm.xlu0 %46, %v16
  %v48 = vpop.permute.xlu0 %47
  %51 = vset.pattern.permute.xlu0 0
  %52 = vperm.xlu0 %51, %v17
  %v53 = vpop.permute.xlu0 %52
  %56 = vset.pattern.permute.xlu0 0
  %57 = vperm.xlu0 %56, %v18
  %v58 = vpop.permute.xlu0 %57
  %v60 = vsub.f32 %v23, %v28
  %v61 = vsub.f32 %v23, %v33
  %v62 = vsub.f32 %v23, %v38
  %v63 = vsub.f32 %v23, %v43
  %v64 = vsub.f32 %v23, %v48
  %v65 = vsub.f32 %v23, %v53
  %v66 = vsub.f32 %v23, %v58
  %v67 = vmul.f32 %v60, -1.0
  %v68 = vmul.f32 %v61, -1.0
  %v69 = vmul.f32 %v62, -1.0
  %v70 = vmul.f32 %v63, -1.0
  %v71 = vmul.f32 %v64, -1.0
  %v72 = vmul.f32 %v65, -1.0
  %v73 = vmul.f32 %v66, -1.0
  %v74 = vmul.f32 %v67, %v60
  %v75 = vmul.f32 %v68, %v61
  %v76 = vmul.f32 %v69, %v62
  %v77 = vmul.f32 %v70, %v63
  %v78 = vmul.f32 %v71, %v64
  %v79 = vmul.f32 %v72, %v65
  %v80 = vmul.f32 %v73, %v66
  %v81 = vmul.f32 %v74, 1.442695
  %v82 = vpow.pop %v81
  %v83 = vmul.f32 %v75, 1.442695
  %v84 = vpow.pop %v83
  %v85 = vmul.f32 %v76, 1.442695
  %v86 = vpow.pop %v85
  %v87 = vmul.f32 %v77, 1.442695
  %v88 = vpow.pop %v87
  %v89 = vmul.f32 %v78, 1.442695
  %v90 = vpow.pop %v89
  %v91 = vmul.f32 %v79, 1.442695
  %v92 = vpow.pop %v91
  %v93 = vmul.f32 %v80, 1.442695
  %v94 = vpow.pop %v93
  %95 = vxpose.xlu0.b32.start [1/16] %v82, 128
  %96 = vxpose.xlu0.b32.cont [2/16] %v84, 128
  %97 = vxpose.xlu0.b32.cont [3/16] %v86, 128
  %98 = vxpose.xlu0.b32.cont [4/16] %v88, 128
  %99 = vxpose.xlu0.b32.cont [5/16] %v90, 128
  %100 = vxpose.xlu0.b32.cont [6/16] %v92, 128
  %101 = vxpose.xlu0.b32.cont [7/16] %v94, 128
  %102 = vxpose.xlu0.b32.cont [8/16] 0.0, 128
  %103 = vxpose.xlu0.b32.cont [9/16] 0.0, 128
  %104 = vxpose.xlu0.b32.cont [10/16] 0.0, 128
  %105 = vxpose.xlu0.b32.cont [11/16] 0.0, 128
  %106 = vxpose.xlu0.b32.cont [12/16] 0.0, 128
  %107 = vxpose.xlu0.b32.cont [13/16] 0.0, 128
  %108 = vxpose.xlu0.b32.cont [14/16] 0.0, 128
  %109 = vxpose.xlu0.b32.cont [15/16] 0.0, 128
  %110 = vxpose.xlu0.b32.end [16/16] 0.0, 128
  %v111 = vpop.trf.xlu0
  %v112 = vpop.trf.xlu0
  %v113 = vpop.trf.xlu0
  %v114 = vpop.trf.xlu0
  %v115 = vpop.trf.xlu0
  %v116 = vpop.trf.xlu0
  %v117 = vpop.trf.xlu0
  %v118 = vpop.trf.xlu0
  %v119 = vpop.trf.xlu0
  %v120 = vpop.trf.xlu0
  %v121 = vpop.trf.xlu0
  %v122 = vpop.trf.xlu0
  %v123 = vpop.trf.xlu0
  %v124 = vpop.trf.xlu0
  %v125 = vpop.trf.xlu0
  %v126 = vpop.trf.xlu0
  %vm127 = vcmask 408576
  %128 = vst.msk [vmem:[%s2] sm:$0xff] %vm127, %v111
  %129 = vst.msk [vmem:[%s2 + $0x8] sm:$0xff] %vm127, %v112
  %130 = vst.msk [vmem:[%s2 + $0x10] sm:$0xff] %vm127, %v113
  %131 = vst.msk [vmem:[%s2 + $0x18] sm:$0xff] %vm127, %v114
  %132 = vst.msk [vmem:[%s2 + $0x20] sm:$0xff] %vm127, %v115
  %133 = vst.msk [vmem:[%s2 + $0x28] sm:$0xff] %vm127, %v116
  %134 = vst.msk [vmem:[%s2 + $0x30] sm:$0xff] %vm127, %v117
  %135 = vst.msk [vmem:[%s2 + $0x38] sm:$0xff] %vm127, %v118
  %136 = vst.msk [vmem:[%s2 + $0x40] sm:$0xff] %vm127, %v119
  %137 = vst.msk [vmem:[%s2 + $0x48] sm:$0xff] %vm127, %v120
  %138 = vst.msk [vmem:[%s2 + $0x50] sm:$0xff] %vm127, %v121
  %139 = vst.msk [vmem:[%s2 + $0x58] sm:$0xff] %vm127, %v122
  %140 = vst.msk [vmem:[%s2 + $0x60] sm:$0xff] %vm127, %v123
  %141 = vst.msk [vmem:[%s2 + $0x68] sm:$0xff] %vm127, %v124
  %142 = vst.msk [vmem:[%s2 + $0x70] sm:$0xff] %vm127, %v125
  %143 = vst.msk [vmem:[%s2 + $0x78] sm:$0xff] %vm127, %v126
  // Predicated region
  $region10: #{tpu_custom_call.1} parent=0 // pred_check
    _
  $region11: #{tpu_custom_call.1} parent=0 // pred_check_branch
    %145 = sbr.rel (0) target = $region13
  $region12: #{tpu_custom_call.1} parent=0 // pred_region
    _
  $region13: #{tpu_custom_call.1} parent=0 // pred_fallthru
    _
  // Predicated region
  $region14: #{tpu_custom_call.1} parent=0 // pred_check
    _
  $region15: #{tpu_custom_call.1} parent=0 // pred_check_branch
    %147 = sbr.rel (0) target = $region17
  $region16: #{tpu_custom_call.1} parent=0 // pred_region
    _
  $region17: #{tpu_custom_call.1} parent=0 // pred_fallthru
    _

// kernel: tpu_custom_call.1
$region0: #{tpu_custom_call.1}
  #allocation0 [shape = 'u32[]', space=smem, size = 0x4, offset = 0x4, fixed_abs, tag = 'smem constant byte address 0x4 - core index']
  #allocation1 [shape = 'u32[144,128]{1,0:T(1,128)}', space=vmem, size = 0x12000, scoped, tag = 'internal scratch']
  %s0 = inlined_call_operand.vmem [shape: f32[500,1], index: 0, kind: input, shape index: {}]
  %s1 = inlined_call_operand.vmem [shape: f32[1,50], index: 1, kind: input, shape index: {}]
  %s2 = inlined_call_operand.vmem [shape: f32[500,50], index: 2, kind: output, shape index: {}]
  %s3 = sld [smem:[#allocation0]]
  $region89: #{tpu_custom_call.1} parent=0
    _
  %s5 = ssub.s32 1, %s3
  %s6 = scalar_select 0, %s5, %s3
  $region1: #{tpu_custom_call.1} parent=0
    #allocation2 [shape = 'u8[65536]{0}', space=vmem, size = 0x10000, scoped, tag = 'output window, operand 0']
    loop: start=0, step=1, limit=10
    $region2: #{tpu_custom_call.1} parent=1 // loop_pre_header
      _
    $region3: #{tpu_custom_call.1} parent=1 // loop_header
      %s8 = sphi 0, %s12
      %p9 = scmp.ge.s32.totalorder %s8, 10
      %s18 = sphi 0, %s20
      %s21 = sphi 0, %s18
      %s22 = sphi 0, %s21
      %s38 = sphi 0, %s22
      %s42 = sphi 0, %s42
      %s44 = sphi 0, %s42
      %s45 = sphi 0, %s44
      %s59 = sphi 0, %s45
      %s65 = sphi 0, %s67
      %s68 = sphi 0, %s65
      %s69 = sphi 0, %s68
      %s85 = sphi 0, %s69
    $region4: #{tpu_custom_call.1} parent=1 // loop_header_branch
      %11 = sbr.rel (%p9) target = $region8
    $region5: #{tpu_custom_call.1} parent=1 // loop_body
      %s13 = ssub.s32 %s8, 1
      %s14 = ssub.s32 %s8, 2
      %s15 = sadd.s32 %s8, 1
      %s16 = ssub.s32 %s8, %s15
      %p17 = scmp.eq.s32.totalorder %s16, 0
      %s19 = sadd.s32 %s18, 1
      %s20 = scalar_select %p17, %s18, %s19
      %p23 = pneg %p17
      %p24 = scmp.eq.s32.totalorder %s8, 7
      %p25 = por %p23, %p24
      %p26 = scmp.ne.s32.totalorder %s18, %s21
      %p27 = scmp.eq.s32.totalorder %s8, 0
      %p28 = por %p26, %p27
      %p29 = scmp.ne.s32.totalorder %s18, %s21
      %p30 = scmp.eq.s32.totalorder %s13, 7
      %p31 = por %p29, %p30
      %p32 = scmp.ne.s32.totalorder %s21, %s22
      %p33 = scmp.eq.s32.totalorder %s13, 0
      %p34 = por %p32, %p33
      %p35 = scmp.ne.s32.totalorder %s21, %s22
      %p36 = scmp.eq.s32.totalorder %s14, 7
      %p37 = por %p35, %p36
      %p39 = scmp.ne.s32.totalorder %s22, %s38
      %p40 = scmp.eq.s32.totalorder %s14, 0
      %p41 = por %p39, %p40
      %s43 = sadd.s32 %s42, 1
      %p46 = scmp.eq.s32.totalorder %s8, 7
      %p47 = scmp.ne.s32.totalorder %s42, %s44
      %p48 = scmp.eq.s32.totalorder %s8, 0
      %p49 = por %p47, %p48
      %p50 = scmp.ne.s32.totalorder %s42, %s44
      %p51 = scmp.eq.s32.totalorder %s13, 7
      %p52 = por %p50, %p51
      %p53 = scmp.ne.s32.totalorder %s44, %s45
      %p54 = scmp.eq.s32.totalorder %s13, 0
      %p55 = por %p53, %p54
      %p56 = scmp.ne.s32.totalorder %s44, %s45
      %p57 = scmp.eq.s32.totalorder %s14, 7
      %p58 = por %p56, %p57
      %p60 = scmp.ne.s32.totalorder %s45, %s59
      %p61 = scmp.eq.s32.totalorder %s14, 0
      %p62 = por %p60, %p61
      %s63 = ssub.s32 %s8, %s15
      %p64 = scmp.eq.s32.totalorder %s63, 0
      %s66 = sadd.s32 %s65, 1
      %s67 = scalar_select %p64, %s65, %s66
      %p70 = pneg %p64
      %p71 = scmp.eq.s32.totalorder %s8, 7
      %p72 = por %p70, %p71
      %p73 = scmp.ne.s32.totalorder %s65, %s68
      %p74 = scmp.eq.s32.totalorder %s8, 0
      %p75 = por %p73, %p74
      %p76 = scmp.ne.s32.totalorder %s65, %s68
      %p77 = scmp.eq.s32.totalorder %s13, 7
      %p78 = por %p76, %p77
      %p79 = scmp.ne.s32.totalorder %s68, %s69
      %p80 = scmp.eq.s32.totalorder %s13, 0
      %p81 = por %p79, %p80
      %p82 = scmp.ne.s32.totalorder %s68, %s69
      %p83 = scmp.eq.s32.totalorder %s14, 7
      %p84 = por %p82, %p83
      %p86 = scmp.ne.s32.totalorder %s69, %s85
      %p87 = scmp.eq.s32.totalorder %s14, 0
      %p88 = por %p86, %p87
      %p89 = scmp.le.s32.totalorder 1, %s8
      %p90 = scmp.lt.s32.totalorder %s8, 9
      %p91 = pnand %p89, %p90
      %p92 = pneg %p91
      // Predicated region
      $region9: #{tpu_custom_call.1} parent=5 // pred_check
        _
      $region10: #{tpu_custom_call.1} parent=5 // pred_check_branch
        %94 = sbr.rel (%p91) target = $region12
      $region11: #{tpu_custom_call.1} parent=5 // pred_region
        %s95 = ssub.s32 %s8, 1
        // Predicated region
        $region13: #{tpu_custom_call.1} parent=11 // pred_check
          %p96 = pneg %p55
        $region14: #{tpu_custom_call.1} parent=11 // pred_check_branch
          %98 = sbr.rel (%p96) target = $region16
        $region15: #{tpu_custom_call.1} parent=11 // pred_region
          _
        $region16: #{tpu_custom_call.1} parent=11 // pred_fallthru
          _
      $region12: #{tpu_custom_call.1} parent=5 // pred_fallthru
        _
      %p99 = scmp.lt.s32.totalorder %s8, 8
      // Predicated region
      $region17: #{tpu_custom_call.1} parent=5 // pred_check
        %p100 = pneg %p99
      $region18: #{tpu_custom_call.1} parent=5 // pred_check_branch
        %102 = sbr.rel (%p100) target = $region20
      $region19: #{tpu_custom_call.1} parent=5 // pred_region
        // Predicated region
        $region21: #{tpu_custom_call.1} parent=19 // pred_check
          %p103 = pneg %p28
        $region22: #{tpu_custom_call.1} parent=19 // pred_check_branch
          %105 = sbr.rel (%p103) target = $region24
        $region23: #{tpu_custom_call.1} parent=19 // pred_region
          %s106 = smul.u32 8, %s8
          %s107 = ssub.s32 63, %s106
          %p108 = scmp.lt.s32.totalorder %s107, 8
          %s109 = scalar_select %p108, %s107, 8
          %s110 = smul.u32 128, %s109
          %p111 = scmp.lt.s32.totalorder %s106, 62
          %s112 = scalar_select %p111, %s106, 62
          %s113 = smul.addr %s112, 8
          %s114 = scalar_lea.vmem %s0, %s113
          %s115 = smul.u32 8, %s8
          %s116 = ssub.s32 63, %s115
          %p117 = scmp.lt.s32.totalorder %s116, 8
          %s118 = scalar_select %p117, %s116, 8
          %s119 = smul.u32 128, %s118
        $region24: #{tpu_custom_call.1} parent=19 // pred_fallthru
          _
      $region20: #{tpu_custom_call.1} parent=5 // pred_fallthru
        _
      %p120 = scmp.le.s32.totalorder 1, %s8
      %p121 = scmp.lt.s32.totalorder %s8, 9
      %p122 = pnand %p120, %p121
      %p123 = pneg %p122
      // Predicated region
      $region25: #{tpu_custom_call.1} parent=5 // pred_check
        _
      $region26: #{tpu_custom_call.1} parent=5 // pred_check_branch
        %125 = sbr.rel (%p122) target = $region28
      $region27: #{tpu_custom_call.1} parent=5 // pred_region
        %s126 = ssub.s32 %s8, 1
        %s127 = smul.u32 8, %s13
        %s128 = ssub.s32 63, %s127
        %p129 = scmp.lt.s32.totalorder %s128, 8
        %s130 = scalar_select %p129, %s128, 8
        %s131 = smul.u32 128, %s130
        %p132 = scmp.lt.s32.totalorder %s127, 62
        %s133 = scalar_select %p132, %s127, 62
        %s134 = smul.addr %s133, 8
        %s135 = scalar_lea.vmem %s0, %s134
        %p136 = pneg %p34
        %p137 = pneg %p31
        %p138 = pneg %p55
        %p139 = pneg %p52
        %p140 = pneg %p81
        %p141 = pneg %p78
        %s142 = sand.u32 %s68, 1
        %s143 = sand.u32 %s68, 1
        %s144 = smul.addr %s143, 64
        %s145 = scalar_lea.vmem [#allocation2], %s144
        %s146 = smul.u32 8, %s13
        %s147 = ssub.s32 63, %s146
        %p148 = scmp.lt.s32.totalorder %s147, 8
        %s149 = scalar_select %p148, %s147, 8
        %s150 = smul.u32 128, %s149
        %p151 = scmp.lt.s32.totalorder %s146, 62
        %s152 = scalar_select %p151, %s146, 62
        %s153 = smul.addr %s152, 8
        %s154 = scalar_lea.vmem %s0, %s153
        %s155 = smul.u32 8, %s13
        %s156 = ssub.s32 63, %s155
        %p157 = scmp.lt.s32.totalorder %s156, 8
        %s158 = scalar_select %p157, %s156, 8
        %s159 = smul.u32 128, %s158
        %s160 = smul.u32 8, %s13
        %s161 = ssub.s32 63, %s160
        %p162 = scmp.lt.s32.totalorder %s161, 8
        %s163 = scalar_select %p162, %s161, 8
        %s164 = smul.u32 128, %s163
        %v165 = vld [vmem:[%s154] sm:$0xff]
        %v166 = vld [vmem:[%s154 + $0x8] sm:$0xff]
        %v167 = vld [vmem:[%s154 + $0x10] sm:$0xff]
        %v168 = vld [vmem:[%s154 + $0x18] sm:$0xff]
        %v169 = vld [vmem:[%s154 + $0x20] sm:$0xff]
        %v170 = vld [vmem:[%s154 + $0x28] sm:$0xff]
        %v171 = vld [vmem:[%s154 + $0x30] sm:$0xff]
        %v172 = vld [vmem:[%s154 + $0x38] sm:$0xff]
        %v173 = vld [vmem:[%s1] sm:$0x1]
        %175 = vset.pattern.permute.xlu0 0
        %176 = vperm.xlu0 %175, %v165
        %v177 = vpop.permute.xlu0 %176
        %180 = vset.pattern.permute.xlu0 0
        %181 = vperm.xlu0 %180, %v166
        %v182 = vpop.permute.xlu0 %181
        %185 = vset.pattern.permute.xlu0 0
        %186 = vperm.xlu0 %185, %v167
        %v187 = vpop.permute.xlu0 %186
        %190 = vset.pattern.permute.xlu0 0
        %191 = vperm.xlu0 %190, %v168
        %v192 = vpop.permute.xlu0 %191
        %195 = vset.pattern.permute.xlu0 0
        %196 = vperm.xlu0 %195, %v169
        %v197 = vpop.permute.xlu0 %196
        %200 = vset.pattern.permute.xlu0 0
        %201 = vperm.xlu0 %200, %v170
        %v202 = vpop.permute.xlu0 %201
        %205 = vset.pattern.permute.xlu0 0
        %206 = vperm.xlu0 %205, %v171
        %v207 = vpop.permute.xlu0 %206
        %210 = vset.pattern.permute.xlu0 0
        %211 = vperm.xlu0 %210, %v172
        %v212 = vpop.permute.xlu0 %211
        %v215 = vlaneseq
        %v216 = vshrl.u32 %v215, 7
        %v217 = vsub.s32 0, %v216
        %v218 = vrot.slane %v173, %v217
        %v220 = vsub.f32 %v177, %v218
        %v221 = vsub.f32 %v182, %v218
        %v222 = vsub.f32 %v187, %v218
        %v223 = vsub.f32 %v192, %v218
        %v224 = vsub.f32 %v197, %v218
        %v225 = vsub.f32 %v202, %v218
        %v226 = vsub.f32 %v207, %v218
        %v227 = vsub.f32 %v212, %v218
        %v228 = vmul.f32 %v220, -8.0
        %v229 = vmul.f32 %v221, -8.0
        %v230 = vmul.f32 %v222, -8.0
        %v231 = vmul.f32 %v223, -8.0
        %v232 = vmul.f32 %v224, -8.0
        %v233 = vmul.f32 %v225, -8.0
        %v234 = vmul.f32 %v226, -8.0
        %v235 = vmul.f32 %v227, -8.0
        %v236 = vmul.f32 %v228, %v220
        %v237 = vmul.f32 %v229, %v221
        %v238 = vmul.f32 %v230, %v222
        %v239 = vmul.f32 %v231, %v223
        %v240 = vmul.f32 %v232, %v224
        %v241 = vmul.f32 %v233, %v225
        %v242 = vmul.f32 %v234, %v226
        %v243 = vmul.f32 %v235, %v227
        %v244 = vmul.f32 %v236, 1.442695
        %v245 = vpow.pop %v244
        %v246 = vmul.f32 %v237, 1.442695
        %v247 = vpow.pop %v246
        %v248 = vmul.f32 %v238, 1.442695
        %v249 = vpow.pop %v248
        %v250 = vmul.f32 %v239, 1.442695
        %v251 = vpow.pop %v250
        %v252 = vmul.f32 %v240, 1.442695
        %v253 = vpow.pop %v252
        %v254 = vmul.f32 %v241, 1.442695
        %v255 = vpow.pop %v254
        %v256 = vmul.f32 %v242, 1.442695
        %v257 = vpow.pop %v256
        %v258 = vmul.f32 %v243, 1.442695
        %v259 = vpow.pop %v258
        %vm260 = vcmask 408576
        %261 = vst.msk [vmem:[%s145] sm:$0xff] %vm260, %v245
        %262 = vst.msk [vmem:[%s145 + $0x8] sm:$0xff] %vm260, %v247
        %263 = vst.msk [vmem:[%s145 + $0x10] sm:$0xff] %vm260, %v249
        %264 = vst.msk [vmem:[%s145 + $0x18] sm:$0xff] %vm260, %v251
        %265 = vst.msk [vmem:[%s145 + $0x20] sm:$0xff] %vm260, %v253
        %266 = vst.msk [vmem:[%s145 + $0x28] sm:$0xff] %vm260, %v255
        %267 = vst.msk [vmem:[%s145 + $0x30] sm:$0xff] %vm260, %v257
        %268 = vst.msk [vmem:[%s145 + $0x38] sm:$0xff] %vm260, %v259
        %s269 = sand.u32 %s68, 1
        %s270 = sand.u32 %s68, 1
        %s271 = smul.addr %s270, 64
        %s272 = scalar_lea.vmem [#allocation2], %s271
        // Predicated region
        $region29: #{tpu_custom_call.1} parent=27 // pred_check
          %p273 = pneg %p78
        $region30: #{tpu_custom_call.1} parent=27 // pred_check_branch
          %275 = sbr.rel (%p273) target = $region32
        $region31: #{tpu_custom_call.1} parent=27 // pred_region
          %s276 = smul.u32 8, %s13
          %s277 = ssub.s32 63, %s276
          %p278 = scmp.lt.s32.totalorder %s277, 8
          %s279 = scalar_select %p278, %s277, 8
          %s280 = smul.u32 128, %s279
          %p281 = scmp.ne.s32.totalorder 0, %s280
          %s282 = smul.addr %s276, 8
          %s283 = scalar_lea.vmem %s2, %s282
          // Predicated region
          $region33: #{tpu_custom_call.1} parent=31 // pred_check
            %p284 = pneg %p281
          $region34: #{tpu_custom_call.1} parent=31 // pred_check_branch
            %286 = sbr.rel (%p284) target = $region36
          $region35: #{tpu_custom_call.1} parent=31 // pred_region
            // Predicated region
            $region37: #{tpu_custom_call.1} parent=35 // pred_check
              _
            $region38: #{tpu_custom_call.1} parent=35 // pred_check_branch
              %288 = sbr.rel (0) target = $region40
            $region39: #{tpu_custom_call.1} parent=35 // pred_region
              // Predicated region
              $region59: #{tpu_custom_call.1} parent=39 // pred_check
                _
              $region60: #{tpu_custom_call.1} parent=39 // pred_check_branch
                %352 = sbr.rel (0) target = $region62
              $region61: #{tpu_custom_call.1} parent=39 // pred_region
                %s353 = sshrl.u32 %s279, 3
                // While loop
                $region63: #{tpu_custom_call.1} parent=61 // loop_pre_header
                  _
                $region64: #{tpu_custom_call.1} parent=61 // loop_header
                  %s355 = sphi 0, %s357
                  %p356 = scmp.ge.s32.totalorder %s355, %s353
                  %s360 = sphi 0, %s381
                  %s361 = sphi %s272, %s384
                  %s362 = sphi %s283, %s385
                $region65: #{tpu_custom_call.1} parent=61 // loop_header_branch
                  %359 = sbr.rel (%p356) target = $region69
                $region66: #{tpu_custom_call.1} parent=61 // loop_body
                  %v363 = vld [vmem:[%s361] sm:$0xff]
                  %364 = vst [vmem:[%s362] sm:$0xff] %v363
                  %v365 = vld [vmem:[%s361 + $0x8] sm:$0xff]
                  %366 = vst [vmem:[%s362 + $0x8] sm:$0xff] %v365
                  %v367 = vld [vmem:[%s361 + $0x10] sm:$0xff]
                  %368 = vst [vmem:[%s362 + $0x10] sm:$0xff] %v367
                  %v369 = vld [vmem:[%s361 + $0x18] sm:$0xff]
                  %370 = vst [vmem:[%s362 + $0x18] sm:$0xff] %v369
                  %v371 = vld [vmem:[%s361 + $0x20] sm:$0xff]
                  %372 = vst [vmem:[%s362 + $0x20] sm:$0xff] %v371
                  %v373 = vld [vmem:[%s361 + $0x28] sm:$0xff]
                  %374 = vst [vmem:[%s362 + $0x28] sm:$0xff] %v373
                  %v375 = vld [vmem:[%s361 + $0x30] sm:$0xff]
                  %376 = vst [vmem:[%s362 + $0x30] sm:$0xff] %v375
                  %v377 = vld [vmem:[%s361 + $0x38] sm:$0xff]
                  %378 = vst [vmem:[%s362 + $0x38] sm:$0xff] %v377
                  %s379 = sadd.s32 1, %s360
                  %p380 = scmp.ge.s32.totalorder %s379, %s353
                  %s381 = scalar_select %p380, 0, %s379
                  %s382 = smul.u32 %s381, 64
                  %s383 = smul.u32 %s381, 64
                  %s384 = scalar_lea.vmem %s272, %s382 [#allocation2]
                  %s385 = scalar_lea.vmem %s283, %s383
                $region67: #{tpu_custom_call.1} parent=61 // loop_footer
                  %s357 = sadd.s32 %s355, 1
                $region68: #{tpu_custom_call.1} parent=61 // loop_footer_branch
                  %354 = sbr.rel target = $region64
                $region69: #{tpu_custom_call.1} parent=61 // loop_exit
                  _
                %s386 = sshrl.u32 %s279, 3
                %s387 = sand.u32 %s279, 7
                %s388 = smul.u32 %s386, 8
                %s389 = smul.u32 8, %s388
                %s390 = scalar_lea.vmem %s272, %s389 [#allocation2]
                %s391 = smul.u32 8, %s388
                %s392 = scalar_lea.vmem %s283, %s391
                // While loop
                $region70: #{tpu_custom_call.1} parent=61 // loop_pre_header
                  _
                $region71: #{tpu_custom_call.1} parent=61 // loop_header
                  %s394 = sphi 0, %s396
                  %p395 = scmp.ge.s32.totalorder %s394, %s387
                  %s399 = sphi 0, %s406
                  %s400 = sphi %s390, %s409
                  %s401 = sphi %s392, %s410
                $region72: #{tpu_custom_call.1} parent=61 // loop_header_branch
                  %398 = sbr.rel (%p395) target = $region76
                $region73: #{tpu_custom_call.1} parent=61 // loop_body
                  %v402 = vld [vmem:[%s400] sm:$0xff]
                  %403 = vst [vmem:[%s401] sm:$0xff] %v402
                  %s404 = sadd.s32 1, %s399
                  %p405 = scmp.ge.s32.totalorder %s404, %s387
                  %s406 = scalar_select %p405, 0, %s404
                  %s407 = smul.u32 %s406, 8
                  %s408 = smul.u32 %s406, 8
                  %s409 = scalar_lea.vmem %s390, %s407 [#allocation2]
                  %s410 = scalar_lea.vmem %s392, %s408
                $region74: #{tpu_custom_call.1} parent=61 // loop_footer
                  %s396 = sadd.s32 %s394, 1
                $region75: #{tpu_custom_call.1} parent=61 // loop_footer_branch
                  %393 = sbr.rel target = $region71
                $region76: #{tpu_custom_call.1} parent=61 // loop_exit
                  _
              $region62: #{tpu_custom_call.1} parent=39 // pred_fallthru
                _
              // Predicated region
              $region77: #{tpu_custom_call.1} parent=39 // pred_check
                _
              $region78: #{tpu_custom_call.1} parent=39 // pred_check_branch
                %412 = sbr.rel target = $region80
              $region79: #{tpu_custom_call.1} parent=39 // pred_region
                _
              $region80: #{tpu_custom_call.1} parent=39 // pred_fallthru
                _
            $region40: #{tpu_custom_call.1} parent=35 // pred_fallthru
              _
            // Predicated region
            $region41: #{tpu_custom_call.1} parent=35 // pred_check
              _
            $region42: #{tpu_custom_call.1} parent=35 // pred_check_branch
              %290 = sbr.rel target = $region44
            $region43: #{tpu_custom_call.1} parent=35 // pred_region
              %s292 = ssub.s32 256, 1
              %s293 = sshrl.u32 %s279, 3
              // While loop
              $region45: #{tpu_custom_call.1} parent=43 // loop_pre_header
                _
              $region46: #{tpu_custom_call.1} parent=43 // loop_header
                %s295 = sphi 0, %s297
                %p296 = scmp.ge.s32.totalorder %s295, %s293
                %s300 = sphi 0, %s321
                %s301 = sphi %s272, %s324
                %s302 = sphi %s283, %s325
              $region47: #{tpu_custom_call.1} parent=43 // loop_header_branch
                %299 = sbr.rel (%p296) target = $region51
              $region48: #{tpu_custom_call.1} parent=43 // loop_body
                %v303 = vld [vmem:[%s301] sm:%s292]
                %304 = vst [vmem:[%s302] sm:%s292] %v303
                %v305 = vld [vmem:[%s301 + $0x8] sm:%s292]
                %306 = vst [vmem:[%s302 + $0x8] sm:%s292] %v305
                %v307 = vld [vmem:[%s301 + $0x10] sm:%s292]
                %308 = vst [vmem:[%s302 + $0x10] sm:%s292] %v307
                %v309 = vld [vmem:[%s301 + $0x18] sm:%s292]
                %310 = vst [vmem:[%s302 + $0x18] sm:%s292] %v309
                %v311 = vld [vmem:[%s301 + $0x20] sm:%s292]
                %312 = vst [vmem:[%s302 + $0x20] sm:%s292] %v311
                %v313 = vld [vmem:[%s301 + $0x28] sm:%s292]
                %314 = vst [vmem:[%s302 + $0x28] sm:%s292] %v313
                %v315 = vld [vmem:[%s301 + $0x30] sm:%s292]
                %316 = vst [vmem:[%s302 + $0x30] sm:%s292] %v315
                %v317 = vld [vmem:[%s301 + $0x38] sm:%s292]
                %318 = vst [vmem:[%s302 + $0x38] sm:%s292] %v317
                %s319 = sadd.s32 1, %s300
                %p320 = scmp.ge.s32.totalorder %s319, %s293
                %s321 = scalar_select %p320, 0, %s319
                %s322 = smul.u32 %s321, 64
                %s323 = smul.u32 %s321, 64
                %s324 = scalar_lea.vmem %s272, %s322 [#allocation2]
                %s325 = scalar_lea.vmem %s283, %s323
              $region49: #{tpu_custom_call.1} parent=43 // loop_footer
                %s297 = sadd.s32 %s295, 1
              $region50: #{tpu_custom_call.1} parent=43 // loop_footer_branch
                %294 = sbr.rel target = $region46
              $region51: #{tpu_custom_call.1} parent=43 // loop_exit
                _
              %s326 = sshrl.u32 %s279, 3
              %s327 = sand.u32 %s279, 7
              %s328 = smul.u32 %s326, 8
              %s329 = smul.u32 8, %s328
              %s330 = scalar_lea.vmem %s272, %s329 [#allocation2]
              %s331 = smul.u32 8, %s328
              %s332 = scalar_lea.vmem %s283, %s331
              // While loop
              $region52: #{tpu_custom_call.1} parent=43 // loop_pre_header
                _
              $region53: #{tpu_custom_call.1} parent=43 // loop_header
                %s334 = sphi 0, %s336
                %p335 = scmp.ge.s32.totalorder %s334, %s327
                %s339 = sphi 0, %s346
                %s340 = sphi %s330, %s349
                %s341 = sphi %s332, %s350
              $region54: #{tpu_custom_call.1} parent=43 // loop_header_branch
                %338 = sbr.rel (%p335) target = $region58
              $region55: #{tpu_custom_call.1} parent=43 // loop_body
                %v342 = vld [vmem:[%s340] sm:%s292]
                %343 = vst [vmem:[%s341] sm:%s292] %v342
                %s344 = sadd.s32 1, %s339
                %p345 = scmp.ge.s32.totalorder %s344, %s327
                %s346 = scalar_select %p345, 0, %s344
                %s347 = smul.u32 %s346, 8
                %s348 = smul.u32 %s346, 8
                %s349 = scalar_lea.vmem %s330, %s347 [#allocation2]
                %s350 = scalar_lea.vmem %s332, %s348
              $region56: #{tpu_custom_call.1} parent=43 // loop_footer
                %s336 = sadd.s32 %s334, 1
              $region57: #{tpu_custom_call.1} parent=43 // loop_footer_branch
                %333 = sbr.rel target = $region53
              $region58: #{tpu_custom_call.1} parent=43 // loop_exit
                _
            $region44: #{tpu_custom_call.1} parent=35 // pred_fallthru
              _
          $region36: #{tpu_custom_call.1} parent=31 // pred_fallthru
            _
          %413 = vnop
        $region32: #{tpu_custom_call.1} parent=27 // pred_fallthru
          _
      $region28: #{tpu_custom_call.1} parent=5 // pred_fallthru
        _
      %p414 = scmp.le.s32.totalorder 2, %s8
      // Predicated region
      $region81: #{tpu_custom_call.1} parent=5 // pred_check
        %p415 = pneg %p414
      $region82: #{tpu_custom_call.1} parent=5 // pred_check_branch
        %417 = sbr.rel (%p415) target = $region84
      $region83: #{tpu_custom_call.1} parent=5 // pred_region
        %s418 = ssub.s32 %s8, 2
        // Predicated region
        $region85: #{tpu_custom_call.1} parent=83 // pred_check
          %p419 = pneg %p84
        $region86: #{tpu_custom_call.1} parent=83 // pred_check_branch
          %421 = sbr.rel (%p419) target = $region88
        $region87: #{tpu_custom_call.1} parent=83 // pred_region
          %s422 = sand.u32 %s69, 1
          %s423 = sand.u32 %s69, 1
          %s424 = smul.addr %s423, 64
          %s425 = scalar_lea.vmem [#allocation2], %s424
        $region88: #{tpu_custom_call.1} parent=83 // pred_fallthru
          _
      $region84: #{tpu_custom_call.1} parent=5 // pred_fallthru
        _
    $region6: #{tpu_custom_call.1} parent=1 // loop_footer
      %s12 = sadd.s32 1, %s8
    $region7: #{tpu_custom_call.1} parent=1 // loop_footer_branch
      %7 = sbr.rel target = $region3
    $region8: #{tpu_custom_call.1} parent=1 // loop_exit
      _

</llo_original>
